<compile_context>
chip_gen: v7x
topology: tpu7x:2x2x1
jax: 0.10.0
libtpu: 0.0.40
codegen_flags: <defaults>
</compile_context>

<pallas_src>
import math
import functools

import jax
import jax.numpy as jnp
from jax.experimental import pallas as pl
from jax.experimental.pallas import tpu as pltpu

# Python-float constants only (jnp scalars would be captured as kernel constants).
NEG_BIG = -1e30      # finite mask fill: no NaN even for fully-masked rows
DENOM_EPS = 1e-30
_MIB = 1024 * 1024


# ----------------------------------------------------------------------------
# Tiling helpers
# ----------------------------------------------------------------------------
def _pick_tile(dim, target, multiple):
    """Largest divisor of `dim` that is <= target and a multiple of `multiple`.

    Falls back to the full dim, which is always a legal Mosaic block shape.
    """
    for c in range(min(dim, target), 0, -1):
        if dim % c == 0 and c % multiple == 0:
            return c
    return dim


def _pick_head_group(h, d_k, max_width=256):
    """Pack heads per grid block so the feature width is lane-aligned (128)."""
    for hg in range(1, h + 1):
        if h % hg == 0 and (hg * d_k) % 128 == 0 and hg * d_k <= max_width:
            return hg
    for hg in range(h, 0, -1):            # lane-aligned but above the soft cap
        if h % hg == 0 and (hg * d_k) % 128 == 0:
            return hg
    return h                              # no aligned grouping: full d_model width


def _vmem_limit(est_bytes):
    # Cap at 64 MiB (v7x physical); floor at 32 MiB so the compiler has headroom
    # above the default scoped limit (16 MiB v5e / 32 MiB v6e+).
    return int(min(64 * _MIB, max(int(1.5 * est_bytes), 32 * _MIB)))


# ----------------------------------------------------------------------------
# Tiled linear projection kernel: out = x @ w + b
# ----------------------------------------------------------------------------
def _linear_kernel(x_ref, w_ref, b_ref, o_ref, acc_ref, *, compute_dtype):
    @pl.when(pl.program_id(2) == 0)
    def _init():
        acc_ref[...] = jnp.zeros_like(acc_ref)

    acc_ref[...] += jnp.dot(
        x_ref[...].astype(compute_dtype),
        w_ref[...].astype(compute_dtype),
        preferred_element_type=jnp.float32,
    )

    @pl.when(pl.program_id(2) == pl.num_programs(2) - 1)
    def _finalize():
        o_ref[...] = (acc_ref[...] + b_ref[...].astype(jnp.float32)).astype(o_ref.dtype)


def linear(x, w, b, *, compute_dtype=jnp.float32, tm=512, tn=512, tk=512):
    """x: (M, K), w: (K, N), b: (N,) -> (M, N), tiled with fp32 accumulation."""
    M, K = x.shape
    N = w.shape[1]
    tm = _pick_tile(M, tm, 8)
    tn = _pick_tile(N, tn, 128)
    tk = _pick_tile(K, tk, 128)
    grid = (M // tm, N // tn, K // tk)
    b2 = b.reshape(1, N)
    est = 4 * (2 * (tm * tk + tk * tn + tm * tn + tn) + tm * tn)
    kernel = functools.partial(_linear_kernel, compute_dtype=compute_dtype)
    return pl.pallas_call(
        kernel,
        out_shape=jax.ShapeDtypeStruct((M, N), x.dtype),
        grid=grid,
        in_specs=[
            pl.BlockSpec((tm, tk), lambda i, j, kk: (i, kk)),
            pl.BlockSpec((tk, tn), lambda i, j, kk: (kk, j)),
            pl.BlockSpec((1, tn), lambda i, j, kk: (0, j)),
        ],
        out_specs=pl.BlockSpec((tm, tn), lambda i, j, kk: (i, j)),
        scratch_shapes=[pltpu.VMEM((tm, tn), jnp.float32)],
        compiler_params=pltpu.CompilerParams(
            dimension_semantics=("parallel", "parallel", "arbitrary"),
            vmem_limit_bytes=_vmem_limit(est)),
    )(x, w, b2)


# ----------------------------------------------------------------------------
# Attention kernel A: full-row softmax (emits the normalized score output)
# ----------------------------------------------------------------------------
def _mha_full_kernel(*refs, hg, d_k, scale, mask_kind, compute_dtype):
    if mask_kind == "none":
        q_ref, k_ref, v_ref = refs[:3]
        m_ref = None
        out_ref, score_ref = refs[3:5]
    else:
        q_ref, k_ref, v_ref, m_ref = refs[:4]
        out_ref, score_ref = refs[4:6]

    if mask_kind == "key":
        keep = m_ref[0]                                     # (1, Lk)
        key_bias = jnp.where(keep != 0, 0.0, NEG_BIG)       # additive bias, (1, Lk)

    for i in range(hg):                   # static unroll over heads packed in this block
        lo = i * d_k
        q_h = (q_ref[0, :, lo:lo + d_k] * scale).astype(compute_dtype)   # (tq, d_k)
        k_h = k_ref[0, :, lo:lo + d_k].astype(compute_dtype)             # (Lk, d_k)
        v_h = v_ref[0, :, lo:lo + d_k].astype(compute_dtype)             # (Lk, d_k)

        # Q @ K^T as a dot_general contraction on d_k (no explicit K transpose).
        s = jax.lax.dot_general(q_h, k_h, (((1,), (1,)), ((), ())),
                                preferred_element_type=jnp.float32)      # (tq, Lk)
        if mask_kind == "key":
            s = s + key_bias
        elif mask_kind == "full":
            s = jnp.where(m_ref[0, i] == 0, NEG_BIG, s)

        s_max = jnp.max(s, axis=-1, keepdims=True)
        p = jnp.exp(s - s_max)
        denom = jnp.maximum(jnp.sum(p, axis=-1, keepdims=True), DENOM_EPS)
        p = p * (1.0 / denom)                                            # normalized

        score_ref[0, i] = p.astype(score_ref.dtype)
        out_h = jnp.dot(p.astype(compute_dtype), v_h,
                        preferred_element_type=jnp.float32)              # (tq, d_k)
        out_ref[0, :, lo:lo + d_k] = out_h.astype(out_ref.dtype)


# ----------------------------------------------------------------------------
# Attention kernel B: flash-style kv-tiled online softmax (no score output)
# ----------------------------------------------------------------------------
def _mha_flash_kernel(*refs, hg, d_k, scale, mask_kind, compute_dtype):
    if mask_kind == "none":
        q_ref, k_ref, v_ref = refs[:3]
        m_ref = None
        out_ref, m_scr, l_scr, acc_scr = refs[3:7]
    else:
        q_ref, k_ref, v_ref, m_ref = refs[:4]
        out_ref, m_scr, l_scr, acc_scr = refs[4:8]

    kv = pl.program_id(3)

    @pl.when(kv == 0)
    def _init():
        m_scr[...] = jnp.full_like(m_scr, -jnp.inf)
        l_scr[...] = jnp.zeros_like(l_scr)
        acc_scr[...] = jnp.zeros_like(acc_scr)

    if mask_kind == "key":
        keep = m_ref[0]                                     # (1, tkv)
        key_bias = jnp.where(keep != 0, 0.0, NEG_BIG)

    for i in range(hg):
        lo = i * d_k
        q_h = (q_ref[0, :, lo:lo + d_k] * scale).astype(compute_dtype)   # (tq, d_k)
        k_h = k_ref[0, :, lo:lo + d_k].astype(compute_dtype)             # (tkv, d_k)
        v_h = v_ref[0, :, lo:lo + d_k].astype(compute_dtype)             # (tkv, d_k)

        s = jax.lax.dot_general(q_h, k_h, (((1,), (1,)), ((), ())),
                                preferred_element_type=jnp.float32)      # (tq, tkv)
        if mask_kind == "key":
            s = s + key_bias
        elif mask_kind == "full":
            s = jnp.where(m_ref[0, i] == 0, NEG_BIG, s)

        m_prev = m_scr[i]                                                # (tq, 1)
        m_new = jnp.maximum(m_prev, jnp.max(s, axis=-1, keepdims=True))
        alpha = jnp.exp(m_prev - m_new)
        p = jnp.exp(s - m_new)                                           # unnormalized
        l_scr[i] = alpha * l_scr[i] + jnp.sum(p, axis=-1, keepdims=True)
        acc_scr[0, :, lo:lo + d_k] = (
            alpha * acc_scr[0, :, lo:lo + d_k]
            + jnp.dot(p.astype(compute_dtype), v_h,
                      preferred_element_type=jnp.float32))
        m_scr[i] = m_new

    @pl.when(kv == pl.num_programs(3) - 1)
    def _finalize():
        # Normalize the (tq, d_k) accumulator instead of the (tq, Lk) probabilities.
        for i in range(hg):
            lo = i * d_k
            denom = jnp.maximum(l_scr[i], DENOM_EPS)
            out_ref[0, :, lo:lo + d_k] = (
                acc_scr[0, :, lo:lo + d_k] * (1.0 / denom)).astype(out_ref.dtype)


# ----------------------------------------------------------------------------
# Attention dispatch
# ----------------------------------------------------------------------------
def _full_attn_vmem(tq, Lk, width, hg, mask_kind):
    est = 4 * (2 * tq * width + 2 * 2 * Lk * width + 2 * tq * width)   # Q, K, V, out
    est += 4 * 2 * hg * tq * Lk                                        # score
    if mask_kind == "full":
        est += 4 * 2 * hg * tq * Lk
    elif mask_kind == "key":
        est += 4 * 2 * max(Lk, 128)
    est += 4 * 3 * tq * Lk                                             # s/p temporaries
    return est


def _flash_attn_vmem(tq, tkv, width, hg, mask_kind):
    est = 4 * (2 * tq * width + 2 * 2 * tkv * width + 2 * tq * width)
    if mask_kind == "full":
        est += 4 * 2 * hg * tq * tkv
    elif mask_kind == "key":
        est += 4 * 2 * max(tkv, 128)
    est += 4 * (2 * hg * tq * 128 + tq * width)                        # m/l/acc scratch
    est += 4 * 3 * tq * tkv                                            # s/p temporaries
    return est


def scaled_dot_product_attention(qp, kp, vp, mask, *, h, d_k, mask_kind="none",
                                 with_score=True, compute_dtype=jnp.float32,
                                 fused_qkv=False, score_dtype=jnp.float32,
                                 tq_target=256, tkv_target=512):
    """qp/kp/vp: (B, L, d_model), or a single fused (B, L, 3*d_model) projection
    passed three times (fused_qkv=True). Head split is done via BlockSpec indexing."""
    B, Lq, _ = qp.shape
    Lk = kp.shape[1]
    d_model = h * d_k
    hg = _pick_head_group(h, d_k)
    width = hg * d_k
    ng = h // hg
    tq = _pick_tile(Lq, tq_target, 8)
    nq = Lq // tq
    scale = 1.0 / math.sqrt(d_k)

    # Column-block offsets when q/k/v live in one fused (B, L, 3*d_model) projection.
    q_off, k_off, v_off = (0, ng, 2 * ng) if fused_qkv else (0, 0, 0)
    inputs = [qp, kp, vp]

    if with_score:
        # Grid (batch, head-group, q-tile): q-tile iterates fastest, so K/V block
        # indices stay constant across consecutive steps -> no per-step K/V re-DMA.
        grid = (B, ng, nq)
        in_specs = [
            pl.BlockSpec((1, tq, width), lambda b, g, qi, o=q_off: (b, qi, g + o)),
            pl.BlockSpec((1, Lk, width), lambda b, g, qi, o=k_off: (b, 0, g + o)),
            pl.BlockSpec((1, Lk, width), lambda b, g, qi, o=v_off: (b, 0, g + o)),
        ]
        if mask_kind == "key":      # compact (B, 1, Lk) key mask, broadcast in-kernel
            in_specs.append(pl.BlockSpec((1, 1, Lk), lambda b, g, qi: (b, 0, 0)))
            inputs.append(mask)
        elif mask_kind == "full":   # (B, h, Lq, Lk) PyTorch-parity mask
            in_specs.append(pl.BlockSpec((1, hg, tq, Lk), lambda b, g, qi: (b, g, qi, 0)))
            inputs.append(mask)

        out_shapes = (jax.ShapeDtypeStruct((B, Lq, d_model), qp.dtype),
                      jax.ShapeDtypeStruct((B, h, Lq, Lk), score_dtype))
        out_specs = (pl.BlockSpec((1, tq, width), lambda b, g, qi: (b, qi, g)),
                     pl.BlockSpec((1, hg, tq, Lk), lambda b, g, qi: (b, g, qi, 0)))
        kernel = functools.partial(_mha_full_kernel, hg=hg, d_k=d_k, scale=scale,
                                   mask_kind=mask_kind, compute_dtype=compute_dtype)
        out, score = pl.pallas_call(
            kernel,
            out_shape=out_shapes,
            grid=grid,
            in_specs=in_specs,
            out_specs=out_specs,
            compiler_params=pltpu.CompilerParams(
                dimension_semantics=("parallel", "parallel", "parallel"),
                vmem_limit_bytes=_vmem_limit(_full_attn_vmem(tq, Lk, width, hg, mask_kind))),
        )(*inputs)
        return out, score

    # return_score=False: kv-tiled flash path, working set independent of Lk.
    tkv = _pick_tile(Lk, tkv_target, 128)
    nkv = Lk // tkv
    grid = (B, ng, nq, nkv)
    in_specs = [
        pl.BlockSpec((1, tq, width), lambda b, g, qi, kv, o=q_off: (b, qi, g + o)),
        pl.BlockSpec((1, tkv, width), lambda b, g, qi, kv, o=k_off: (b, kv, g + o)),
        pl.BlockSpec((1, tkv, width), lambda b, g, qi, kv, o=v_off: (b, kv, g + o)),
    ]
    if mask_kind == "key":
        in_specs.append(pl.BlockSpec((1, 1, tkv), lambda b, g, qi, kv: (b, 0, kv)))
        inputs.append(mask)
    elif mask_kind == "full":
        in_specs.append(
            pl.BlockSpec((1, hg, tq, tkv), lambda b, g, qi, kv: (b, g, qi, kv)))
        inputs.append(mask)

    kernel = functools.partial(_mha_flash_kernel, hg=hg, d_k=d_k, scale=scale,
                               mask_kind=mask_kind, compute_dtype=compute_dtype)
    out = pl.pallas_call(
        kernel,
        out_shape=jax.ShapeDtypeStruct((B, Lq, d_model), qp.dtype),
        grid=grid,
        in_specs=in_specs,
        out_specs=pl.BlockSpec((1, tq, width), lambda b, g, qi, kv: (b, qi, g)),
        scratch_shapes=[pltpu.VMEM((hg, tq, 1), jnp.float32),     # running max m
                        pltpu.VMEM((hg, tq, 1), jnp.float32),     # running sum l
                        pltpu.VMEM((1, tq, width), jnp.float32)],  # fp32 accumulator
        compiler_params=pltpu.CompilerParams(
            dimension_semantics=("parallel", "parallel", "parallel", "arbitrary"),
            vmem_limit_bytes=_vmem_limit(_flash_attn_vmem(tq, tkv, width, hg, mask_kind))),
    )(*inputs)
    return out, None


# ----------------------------------------------------------------------------
# MultiHeadAttention wrapper
# ----------------------------------------------------------------------------
def init_params(key, d_model):
    """Deterministic nn.Linear-style init. Weights stored as (in, out)."""
    bound = 1.0 / math.sqrt(d_model)
    names = ["fc_q", "fc_k", "fc_v", "fc_concat"]
    params = {}
    keys = jax.random.split(key, 2 * len(names))
    for i, name in enumerate(names):
        w = jax.random.uniform(keys[2 * i], (d_model, d_model), jnp.float32, -bound, bound)
        b = jax.random.uniform(keys[2 * i + 1], (d_model,), jnp.float32, -bound, bound)
        params[name] = (w, b)
    # Pre-fuse the QKV projection ONCE at init (no per-forward weight concat).
    params["fc_qkv"] = (
        jnp.concatenate([params["fc_q"][0], params["fc_k"][0], params["fc_v"][0]], axis=1),
        jnp.concatenate([params["fc_q"][1], params["fc_k"][1], params["fc_v"][1]], axis=0),
    )
    return params


def multihead_attention(params, q, k, v, mask, h, *, compute_dtype=jnp.float32,
                        return_score=True, score_dtype=jnp.float32):
    """Mirrors MultiHeadAttention.forward (dropout = identity / eval mode)."""
    B, Lq, d_model = q.shape
    Lk = k.shape[1]
    d_k = d_model // h
    width = _pick_head_group(h, d_k) * d_k

    fused = (q is k) and (k is v) and ("fc_qkv" in params)
    if fused:
        w_qkv, b_qkv = params["fc_qkv"]
        qkv = linear(q.reshape(B * Lq, d_model), w_qkv, b_qkv,
                     compute_dtype=compute_dtype).reshape(B, Lq, 3 * d_model)
        if width % 128 == 0:
            # Q/K/V split done purely by BlockSpec column-block offsets inside the
            # attention kernel: no materialized qp/kp/vp copies in HBM.
            qp = kp = vp = qkv
            fused_specs = True
        else:
            # Lane-alignment fallback (block width must be %128 or the full feature dim).
            qp = qkv[..., 0 * d_model:1 * d_model]
            kp = qkv[..., 1 * d_model:2 * d_model]
            vp = qkv[..., 2 * d_model:3 * d_model]
            fused_specs = False
    else:
        qp = linear(q.reshape(B * Lq, d_model), *params["fc_q"],
                    compute_dtype=compute_dtype).reshape(B, Lq, d_model)
        kp = linear(k.reshape(B * Lk, d_model), *params["fc_k"],
                    compute_dtype=compute_dtype).reshape(B, Lk, d_model)
        vp = linear(v.reshape(B * Lk, d_model), *params["fc_v"],
                    compute_dtype=compute_dtype).reshape(B, Lk, d_model)
        fused_specs = False

    # Mask normalization.
    if mask is None:
        mask_kind, mask_arr = "none", None
    elif mask.ndim == 2:                       # (B, Lk) key-padding mask (fast path)
        mask_kind, mask_arr = "key", mask.reshape(B, 1, Lk)
    else:                                      # (B, h, Lq, Lk) full mask (parity path)
        mask_kind, mask_arr = "full", mask

    attn_out, attn_score = scaled_dot_product_attention(
        qp, kp, vp, mask_arr, h=h, d_k=d_k, mask_kind=mask_kind,
        with_score=return_score, compute_dtype=compute_dtype,
        fused_qkv=fused_specs, score_dtype=score_dtype)

    # dropout: identity (eval mode), then final projection.
    out = linear(attn_out.reshape(B * Lq, d_model), *params["fc_concat"],
                 compute_dtype=compute_dtype).reshape(B, Lq, d_model)
    return out, attn_score


# ----------------------------------------------------------------------------
# Pure-JAX reference for verification
# ----------------------------------------------------------------------------
def reference(params, q, k, v, mask, h):
    B, Lq, d_model = q.shape
    Lk = k.shape[1]
    d_k = d_model // h

    def lin(x, wb):
        w, b = wb
        return x @ w + b

    qp = lin(q, params["fc_q"]).reshape(B, Lq, h, d_k).transpose(0, 2, 1, 3)
    kp = lin(k, params["fc_k"]).reshape(B, Lk, h, d_k).transpose(0, 2, 1, 3)
    vp = lin(v, params["fc_v"]).reshape(B, Lk, h, d_k).transpose(0, 2, 1, 3)

    s = jnp.einsum("bhqd,bhkd->bhqk", qp / math.sqrt(d_k), kp)
    if mask is not None:
        if mask.ndim == 2:
            mask = jnp.broadcast_to(mask[:, None, None, :], (B, h, Lq, Lk))
        s = jnp.where(mask == 0, -jnp.inf, s)
    p = jax.nn.softmax(s, axis=-1)
    o = jnp.einsum("bhqk,bhkd->bhqd", p, vp)
    o = o.transpose(0, 2, 1, 3).reshape(B, Lq, d_model)
    out = lin(o, params["fc_concat"])
    return out, p


# ----------------------------------------------------------------------------
if __name__ == "__main__":
    B, L, d_model, h = 2, 8, 32, 4

    key = jax.random.PRNGKey(0)
    k_par, k_q, k_k, k_v = jax.random.split(key, 4)

    params = init_params(k_par, d_model)
    q = jax.random.normal(k_q, (B, L, d_model), jnp.float32)
    k = jax.random.normal(k_k, (B, L, d_model), jnp.float32)
    v = jax.random.normal(k_v, (B, L, d_model), jnp.float32)

    # Padding-style mask: batch 0 sees all 8 keys, batch 1 sees first 6 keys.
    valid = jnp.array([8, 6])
    key_mask = (jnp.arange(L)[None, :] < valid[:, None]).astype(jnp.float32)  # (B, Lk)
    full_mask = jnp.broadcast_to(key_mask[:, None, None, :], (B, h, L, L))    # (B,h,Lq,Lk)

    # 1) PyTorch-parity path: distinct q/k/v + full (B, h, Lq, Lk) mask.
    out, score = multihead_attention(params, q, k, v, full_mask, h)
    out = jax.block_until_ready(out)
    score = jax.block_until_ready(score)
    out_ref, score_ref = reference(params, q, k, v, full_mask, h)
    assert out.shape == (B, L, d_model)
    assert score.shape == (B, h, L, L)
    assert jnp.allclose(out, out_ref, atol=1e-5, rtol=1e-5)
    assert jnp.allclose(score, score_ref, atol=1e-5, rtol=1e-5)

    # 2) Self-attention fast path: fused QKV projection + compact (B, Lk) key mask.
    out2, score2 = multihead_attention(params, q, q, q, key_mask, h)
    out2 = jax.block_until_ready(out2)
    out2_ref, score2_ref = reference(params, q, q, q, key_mask, h)
    assert jnp.allclose(out2, out2_ref, atol=1e-5, rtol=1e-5)
    assert jnp.allclose(score2, score2_ref, atol=1e-5, rtol=1e-5)

    # 3) No mask, score skipped -> flash kv-tiled path (no O(L^2) score write).
    out3, score3 = multihead_attention(params, q, k, v, None, h, return_score=False)
    out3 = jax.block_until_ready(out3)
    out3_ref, _ = reference(params, q, k, v, None, h)
    assert score3 is None
    assert jnp.allclose(out3, out3_ref, atol=1e-5, rtol=1e-5)

    # 4) Self-attention, key mask, flash path (fused projection + online softmax).
    out4, score4 = multihead_attention(params, q, q, q, key_mask, h, return_score=False)
    out4 = jax.block_until_ready(out4)
    assert score4 is None
    assert jnp.allclose(out4, out2_ref, atol=1e-5, rtol=1e-5)

    # 5) bf16 MXU operands with fp32 accumulation (v6e/v7x fast path), loose tolerance.
    out5, _ = multihead_attention(params, q, k, v, full_mask, h,
                                  compute_dtype=jnp.bfloat16)
    out5 = jax.block_until_ready(out5)
    assert jnp.allclose(out5, out_ref, atol=5e-2, rtol=5e-2)

    print("KERNEL_OK")
</pallas_src>

<mosaic_0001>
module attributes {stable_mosaic.version = 11 : i64} {
  func.func @_linear_kernel(%arg0: i32, %arg1: i32, %arg2: i32, %arg3: memref<16x32xf32, #tpu.memory_space<vmem>>, %arg4: memref<32x32xf32, #tpu.memory_space<vmem>>, %arg5: memref<1x32xf32, #tpu.memory_space<vmem>>, %arg6: memref<16x32xf32, #tpu.memory_space<vmem>>, %arg7: memref<16x32xf32, #tpu.memory_space<vmem>>) attributes {dimension_semantics = [#tpu.dimension_semantics<parallel>, #tpu.dimension_semantics<parallel>, #tpu.dimension_semantics<arbitrary>], iteration_bounds = array<i64: 1, 1, 1>, scalar_prefetch = 0 : i64, scratch_operands = 1 : i64, tpu.core_type = #tpu.core_type<tc>, window_params = [{transform_indices = @transform_0, window_bounds = array<i64: 16, 32>}, {transform_indices = @transform_1, window_bounds = array<i64: 32, 32>}, {transform_indices = @transform_2, window_bounds = array<i64: 1, 32>}, {transform_indices = @transform_3, window_bounds = array<i64: 16, 32>}]} {
    %c0_i32 = arith.constant 0 : i32
    %0 = arith.cmpi eq, %arg2, %c0_i32 : i32
    %1 = arith.extui %0 : i1 to i32
    %c0_i32_0 = arith.constant 0 : i32
    %2 = arith.cmpi ne, %1, %c0_i32_0 : i32
    scf.if %2 {
      %cst_10 = arith.constant 0.000000e+00 : f32
      %12 = vector.broadcast %cst_10 : f32 to vector<16x32xf32>
      %c0_11 = arith.constant 0 : index
      %c0_12 = arith.constant 0 : index
      %13 = vector.load %arg7[%c0_11, %c0_12] : memref<16x32xf32, #tpu.memory_space<vmem>>, vector<16x32xf32>
      tpu.vector_store %arg7[%c0_11, %c0_12], %12 {strides = array<i32>} : memref<16x32xf32, #tpu.memory_space<vmem>>, vector<16x32xf32>,
    } else {
    }
    %c0 = arith.constant 0 : index
    %c0_1 = arith.constant 0 : index
    %3 = vector.load %arg7[%c0, %c0_1] : memref<16x32xf32, #tpu.memory_space<vmem>>, vector<16x32xf32>
    %c0_2 = arith.constant 0 : index
    %c0_3 = arith.constant 0 : index
    %4 = vector.load %arg3[%c0_2, %c0_3] : memref<16x32xf32, #tpu.memory_space<vmem>>, vector<16x32xf32>
    %c0_4 = arith.constant 0 : index
    %c0_5 = arith.constant 0 : index
    %5 = vector.load %arg4[%c0_4, %c0_5] : memref<32x32xf32, #tpu.memory_space<vmem>>, vector<32x32xf32>
    %cst = arith.constant dense<0.000000e+00> : vector<16x32xf32>
    %6 = tpu.matmul %4, %5, %cst {dimension_numbers = #tpu.dot_dimension_numbers<[1], [0], [0], [1], [0, 0, 1, 1], [], []>} : vector<16x32xf32>, vector<32x32xf32>, vector<16x32xf32> -> vector<16x32xf32>
    %7 = arith.addf %3, %6 : vector<16x32xf32>
    %c0_6 = arith.constant 0 : index
    %c0_7 = arith.constant 0 : index
    %8 = vector.load %arg7[%c0_6, %c0_7] : memref<16x32xf32, #tpu.memory_space<vmem>>, vector<16x32xf32>
    tpu.vector_store %arg7[%c0_6, %c0_7], %7 {strides = array<i32>} : memref<16x32xf32, #tpu.memory_space<vmem>>, vector<16x32xf32>,
    %c0_i32_8 = arith.constant 0 : i32
    %9 = arith.cmpi eq, %arg2, %c0_i32_8 : i32
    %10 = arith.extui %9 : i1 to i32
    %c0_i32_9 = arith.constant 0 : i32
    %11 = arith.cmpi ne, %10, %c0_i32_9 : i32
    scf.if %11 {
      %c0_10 = arith.constant 0 : index
      %c0_11 = arith.constant 0 : index
      %12 = vector.load %arg7[%c0_10, %c0_11] : memref<16x32xf32, #tpu.memory_space<vmem>>, vector<16x32xf32>
      %c0_12 = arith.constant 0 : index
      %c0_13 = arith.constant 0 : index
      %13 = vector.load %arg5[%c0_12, %c0_13] : memref<1x32xf32, #tpu.memory_space<vmem>>, vector<1x32xf32>
      %14 = vector.broadcast %13 : vector<1x32xf32> to vector<16x32xf32>
      %15 = arith.addf %12, %14 : vector<16x32xf32>
      %c0_14 = arith.constant 0 : index
      %c0_15 = arith.constant 0 : index
      %16 = vector.load %arg6[%c0_14, %c0_15] : memref<16x32xf32, #tpu.memory_space<vmem>>, vector<16x32xf32>
      tpu.vector_store %arg6[%c0_14, %c0_15], %15 {strides = array<i32>} : memref<16x32xf32, #tpu.memory_space<vmem>>, vector<16x32xf32>,
    } else {
    }
    return
  }
  func.func @transform_0(%arg0: i32, %arg1: i32, %arg2: i32) -> (i32, i32) {
    %c0_i32 = arith.constant 0 : i32
    return %arg0, %arg2 : i32, i32
  }
  func.func @transform_1(%arg0: i32, %arg1: i32, %arg2: i32) -> (i32, i32) {
    %c0_i32 = arith.constant 0 : i32
    return %arg2, %arg1 : i32, i32
  }
  func.func @transform_2(%arg0: i32, %arg1: i32, %arg2: i32) -> (i32, i32) {
    %c0_i32 = arith.constant 0 : i32
    %c0_i32_0 = arith.constant 0 : i32
    return %c0_i32, %arg1 : i32, i32
  }
  func.func @transform_3(%arg0: i32, %arg1: i32, %arg2: i32) -> (i32, i32) {
    %c0_i32 = arith.constant 0 : i32
    return %arg0, %arg1 : i32, i32
  }
}

</mosaic_0001>

<llo_original>
// kernel: tpu_custom_call.1
$region0: #{tpu_custom_call.1}
  #allocation0 [shape = 'u32[]', space=smem, size = 0x4, offset = 0x4, fixed_abs, tag = 'smem constant byte address 0x4 - core index']
  #allocation1 [shape = 'u32[144,128]{1,0:T(1,128)}', space=vmem, size = 0x12000, scoped, tag = 'internal scratch']
  #allocation2 [shape = 'f32[16,32]{1,0:T(8,128)}', space=vmem, size = 0x2000, scoped, tag = 'scratch operand']
  %s0 = inlined_call_operand.hbm [shape: f32[16,32], index: 0, kind: input, shape index: {}]
  %s1 = inlined_call_operand.hbm [shape: f32[32,32], index: 1, kind: input, shape index: {}]
  %s2 = inlined_call_operand.vmem [shape: f32[1,32], index: 2, kind: input, shape index: {}]
  %s3 = inlined_call_operand.hbm [shape: f32[16,32], index: 3, kind: output, shape index: {}]
  %s4 = sld [smem:[#allocation0]]
  $region38: #{tpu_custom_call.1} parent=0
    _
  %s6 = ssub.s32 1, %s4
  %s7 = scalar_select 0, %s6, %s4
  $region1: #{tpu_custom_call.1} parent=0
    #allocation3 [shape = 'u8[8192]{0}', space=vmem, size = 0x2000, scoped, tag = 'input window, operand 0, single buffered']
    #allocation4 [shape = 's32[1]{0}', space=sflag, size = 0x4, scoped, tag = 'scoped memory for tpu_custom_call.1']
    #allocation5 [shape = 's32[1]{0}', space=sflag, size = 0x4, scoped, tag = 'scoped memory for tpu_custom_call.1']
    #allocation6 [shape = 'u8[16384]{0}', space=vmem, size = 0x4000, scoped, tag = 'input window, operand 1, single buffered']
    #allocation7 [shape = 's32[1]{0}', space=sflag, size = 0x4, scoped, tag = 'scoped memory for tpu_custom_call.1']
    #allocation8 [shape = 'u8[8192]{0}', space=vmem, size = 0x2000, scoped, tag = 'output window, operand 0, single buffered']
    %8 = vsyncpa [#allocation4], 0
    %9 = vsyncpa [#allocation7], 0
    %10 = vsyncpa [#allocation5], 0
    // Predicated region
    $region2: #{tpu_custom_call.1} parent=1 // pred_check
      _
    $region3: #{tpu_custom_call.1} parent=1 // pred_check_branch
      %12 = sbr.rel (0) target = $region5
    $region4: #{tpu_custom_call.1} parent=1 // pred_region
      %s14 = ssub.s32 256, 256
      %15 = vsyncadd [#allocation4], %s14
      %s16 = sshll.u32 [#allocation3], 4
      %s17 = int_to_ptr.vmem [resolvable:$true] %s16
      %22 = dma.hbm_to_vmem [thread:$0]  %s0, 256, %s17, [#allocation4], 128, 128, 8
    $region5: #{tpu_custom_call.1} parent=1 // pred_fallthru
      _
    // Predicated region
    $region6: #{tpu_custom_call.1} parent=1 // pred_check
      _
    $region7: #{tpu_custom_call.1} parent=1 // pred_check_branch
      %24 = sbr.rel (0) target = $region9
    $region8: #{tpu_custom_call.1} parent=1 // pred_region
      %s26 = ssub.s32 512, 512
      %27 = vsyncadd [#allocation7], %s26
      %s28 = sshll.u32 [#allocation6], 4
      %s29 = int_to_ptr.vmem [resolvable:$true] %s28
      %34 = dma.hbm_to_vmem [thread:$0]  %s1, 512, %s29, [#allocation7], 128, 128, 8
    $region9: #{tpu_custom_call.1} parent=1 // pred_fallthru
      _
    // Predicated region
    $region10: #{tpu_custom_call.1} parent=1 // pred_check
      _
    $region11: #{tpu_custom_call.1} parent=1 // pred_check_branch
      %36 = sbr.rel (0) target = $region13
    $region12: #{tpu_custom_call.1} parent=1 // pred_region
      _
    $region13: #{tpu_custom_call.1} parent=1 // pred_fallthru
      _
    // Predicated region
    $region14: #{tpu_custom_call.1} parent=1 // pred_check
      _
    $region15: #{tpu_custom_call.1} parent=1 // pred_check_branch
      %38 = sbr.rel (0) target = $region17
    $region16: #{tpu_custom_call.1} parent=1 // pred_region
      %39 = dma.done [#allocation4], 256
    $region17: #{tpu_custom_call.1} parent=1 // pred_fallthru
      _
    // Predicated region
    $region18: #{tpu_custom_call.1} parent=1 // pred_check
      _
    $region19: #{tpu_custom_call.1} parent=1 // pred_check_branch
      %41 = sbr.rel (0) target = $region21
    $region20: #{tpu_custom_call.1} parent=1 // pred_region
      %42 = dma.done [#allocation7], 512
    $region21: #{tpu_custom_call.1} parent=1 // pred_fallthru
      _
    %p43 = scmp.eq.s32.totalorder 0, 0
    // Predicated region
    $region22: #{tpu_custom_call.1} parent=1 // pred_check
      %p44 = pneg %p43
    $region23: #{tpu_custom_call.1} parent=1 // pred_check_branch
      %46 = sbr.rel (%p44) target = $region25
    $region24: #{tpu_custom_call.1} parent=1 // pred_region
      %vm47 = vcmask 261120
      %48 = vst.msk [vmem:[#allocation2] sm:$0xff] %vm47, 0.0
      %49 = vst.msk [vmem:[#allocation2 + $0x8] sm:$0xff] %vm47, 0.0
    $region25: #{tpu_custom_call.1} parent=1 // pred_fallthru
      _
    %v50 = vld [vmem:[#allocation2] sm:$0xff]
    %v51 = vld [vmem:[#allocation2 + $0x8] sm:$0xff]
    %v52 = vld [vmem:[#allocation3] sm:$0xff]
    %v53 = vld [vmem:[#allocation3 + $0x8] sm:$0xff]
    %v54 = vld [vmem:[#allocation6] sm:$0xff]
    %v55 = vld [vmem:[#allocation6 + $0x8] sm:$0xff]
    %v56 = vld [vmem:[#allocation6 + $0x10] sm:$0xff]
    %v57 = vld [vmem:[#allocation6 + $0x18] sm:$0xff]
    %vm58 = vcmask 261120
    %v60 = vsel %vm58, %v52, 0
    %v63 = vsel %vm58, %v53, 0
    %65 = vmatprep.subr.mxu0 0.0
    %66 = vmatpush1.msra.mxu0 %v54
    %67 = vmatprep.subr.mxu0 0.0
    %68 = vmatpush1.msra.mxu0 %v55
    %69 = vmatprep.subr.mxu0 0.0
    %70 = vmatpush1.msra.mxu0 %v56
    %71 = vmatprep.subr.mxu0 0.0
    %72 = vmatpush1.msra.mxu0 %v57
    %73 = vmatprep.subr.mxu0 0.0
    %74 = vmatpush1.msra.mxu0 0.0
    %75 = vmatprep.subr.mxu0 0.0
    %76 = vmatpush1.msra.mxu0 0.0
    %77 = vmatprep.subr.mxu0 0.0
    %78 = vmatpush1.msra.mxu0 0.0
    %79 = vmatprep.subr.mxu0 0.0
    %80 = vmatpush1.msra.mxu0 0.0
    %81 = vmatprep.subr.mxu0 0.0
    %82 = vmatpush1.msra.mxu0 0.0
    %83 = vmatprep.subr.mxu0 0.0
    %84 = vmatpush1.msra.mxu0 0.0
    %85 = vmatprep.subr.mxu0 0.0
    %86 = vmatpush1.msra.mxu0 0.0
    %87 = vmatprep.subr.mxu0 0.0
    %88 = vmatpush1.msra.mxu0 0.0
    %89 = vmatprep.subr.mxu0 0.0
    %90 = vmatpush1.msra.mxu0 0.0
    %91 = vmatprep.subr.mxu0 0.0
    %92 = vmatpush1.msra.mxu0 0.0
    %93 = vmatprep.subr.mxu0 0.0
    %94 = vmatpush1.msra.mxu0 0.0
    %95 = vmatprep.subr.mxu0 0.0
    %96 = vmatpush1.msra.mxu0 0.0
    %97 = vmatprep.subr.mxu0 0.0
    %98 = vmatpush1.msra.mxu0 0.0
    %99 = vmatprep.subr.mxu0 0.0
    %100 = vmatpush1.msra.mxu0 0.0
    %101 = vmatprep.subr.mxu0 0.0
    %102 = vmatpush1.msra.mxu0 0.0
    %103 = vmatprep.subr.mxu0 0.0
    %104 = vmatpush1.msra.mxu0 0.0
    %105 = vmatprep.subr.mxu0 0.0
    %106 = vmatpush1.msra.mxu0 0.0
    %107 = vmatprep.subr.mxu0 0.0
    %108 = vmatpush1.msra.mxu0 0.0
    %109 = vmatprep.subr.mxu0 0.0
    %110 = vmatpush1.msra.mxu0 0.0
    %111 = vmatprep.subr.mxu0 0.0
    %112 = vmatpush1.msra.mxu0 0.0
    %113 = vmatprep.subr.mxu0 0.0
    %114 = vmatpush1.msra.mxu0 0.0
    %115 = vmatprep.subr.mxu0 0.0
    %116 = vmatpush1.msra.mxu0 0.0
    %117 = vmatprep.subr.mxu0 0.0
    %118 = vmatpush1.msra.mxu0 0.0
    %119 = vmatprep.subr.mxu0 0.0
    %120 = vmatpush1.msra.mxu0 0.0
    %121 = vmatprep.subr.mxu0 0.0
    %122 = vmatpush1.msra.mxu0 0.0
    %123 = vmatprep.subr.mxu0 0.0
    %124 = vmatpush1.msra.mxu0 0.0
    %125 = vmatprep.subr.mxu0 0.0
    %126 = vmatpush1.msra.mxu0 0.0
    %127 = vmatprep.subr.mxu0 0.0
    %128 = vmatpush1.msra.mxu0 0.0
    %129 = vmatprep.mubr.f32.mxu0 0.0
    %130 = vmatmul.mubr.f32.gmra.mrb[0].mxu0 %v60
    %v131 = vpop.f32.mrb[0].mxu0
    %v132 = vadd.f32 0.0, %v131
    %v133 = vpop.f32.mrb[0].mxu0
    %134 = vmatprep.mubr.f32.mxu0 0.0
    %135 = vmatmul.mubr.f32.gmra.mrb[0].mxu0 %v63
    %v136 = vpop.f32.mrb[0].mxu0
    %v137 = vadd.f32 0.0, %v136
    %v138 = vpop.f32.mrb[0].mxu0
    %139 = vdwg.mxu0
    %v140 = vadd.f32 %v50, %v132
    %v141 = vadd.f32 %v51, %v137
    %142 = vst.msk [vmem:[#allocation2] sm:$0xff] %vm58, %v140
    %143 = vst.msk [vmem:[#allocation2 + $0x8] sm:$0xff] %vm58, %v141
    // Predicated region
    $region26: #{tpu_custom_call.1} parent=1 // pred_check
      %p144 = pneg %p43
    $region27: #{tpu_custom_call.1} parent=1 // pred_check_branch
      %146 = sbr.rel (%p144) target = $region29
    $region28: #{tpu_custom_call.1} parent=1 // pred_region
      %v147 = vld [vmem:[#allocation2] sm:$0xff]
      %v148 = vld [vmem:[#allocation2 + $0x8] sm:$0xff]
      %v149 = vld [vmem:[%s2] sm:$0x1]
      %v151 = vlaneseq
      %v152 = vshrl.u32 %v151, 7
      %v153 = vsub.s32 0, %v152
      %v154 = vrot.slane %v149, %v153
      %v156 = vadd.f32 %v147, %v154
      %v157 = vadd.f32 %v148, %v154
      %158 = vst.msk [vmem:[#allocation8] sm:$0xff] %vm58, %v156
      %159 = vst.msk [vmem:[#allocation8 + $0x8] sm:$0xff] %vm58, %v157
    $region29: #{tpu_custom_call.1} parent=1 // pred_fallthru
      _
    // Predicated region
    $region30: #{tpu_custom_call.1} parent=1 // pred_check
      _
    $region31: #{tpu_custom_call.1} parent=1 // pred_check_branch
      %161 = sbr.rel (0) target = $region33
    $region32: #{tpu_custom_call.1} parent=1 // pred_region
      %s163 = ssub.s32 256, 256
      %164 = vsyncadd [#allocation5], %s163
      %s165 = sshll.u32 [#allocation8], 4
      %s166 = int_to_ptr.vmem [resolvable:$true] %s165
      %171 = dma.vmem_to_hbm [thread:$0]  %s166, 256, %s3, [#allocation5], 128, 128, 8
    $region33: #{tpu_custom_call.1} parent=1 // pred_fallthru
      _
    // Predicated region
    $region34: #{tpu_custom_call.1} parent=1 // pred_check
      _
    $region35: #{tpu_custom_call.1} parent=1 // pred_check_branch
      %173 = sbr.rel (0) target = $region37
    $region36: #{tpu_custom_call.1} parent=1 // pred_region
      %174 = dma.done [#allocation5], 256
    $region37: #{tpu_custom_call.1} parent=1 // pred_fallthru
      _
    %175 = vsyncpa [#allocation4], 1
    %176 = vsyncpa [#allocation7], 1
    %177 = vsyncpa [#allocation5], 1

</llo_original>
